<compile_context>
chip_gen: v7x
topology: tpu7x:2x2x1
jax: 0.10.0
libtpu: 0.0.40
codegen_flags: <defaults>
</compile_context>

<pallas_src>
import jax
import jax.numpy as jnp
from jax.experimental import pallas as pl
from jax.experimental.pallas import tpu as pltpu

# Synthetic stand-in for get_log_probs_precision() (not provided in the source).
LOG_PROBS_PRECISION = -20.0


def normalize_emission(log_em, log_probs_precision=LOG_PROBS_PRECISION):
    """Plain-JAX glue mirroring CategoricalEmission.normalize_emission."""
    log_em = log_em.at[0, :].set(log_probs_precision)
    log_em = log_em.at[0, 0].set(0.0)
    log_em = log_em.at[1:, 0].set(log_probs_precision)
    return jax.nn.log_softmax(log_em, axis=1)


def _gather_kernel(obs_ref, table_ref, out_ref):
    # obs_ref:   (1, T_TILE)      int32   -- observation indices for this tile
    # table_ref: (S_pad, O_pad)   float32 -- column-log-softmaxed emission table
    # out_ref:   (S_pad, T_TILE)  float32 -- table[:, obs_tile]
    obs = obs_ref[...]                               # (1, T_TILE)
    o_pad = table_ref.shape[1]
    t_tile = obs.shape[1]

    # One-hot over observation classes: (O_pad, T_TILE).  Comparison is pure
    # VPU work; the broadcast of obs along sublanes is free in layout.
    class_ids = jax.lax.broadcasted_iota(jnp.int32, (o_pad, t_tile), 0)
    onehot = (class_ids == obs).astype(jnp.float32)

    # Column gather table[:, obs] expressed as an MXU matmul.  S is tiny so
    # the MXU is under-filled, but after the softmax hoist the kernel is
    # store/overhead bound and this path lowers robustly on all generations.
    out_ref[...] = jnp.dot(table_ref[...], onehot,
                           preferred_element_type=jnp.float32)


def categorical_emission_forward(log_em, obs, t_tile=1024):
    """Pallas-backed equivalent of CategoricalEmission.forward(obs)."""
    S, O = log_em.shape
    T = obs.shape[0]

    # Hoisted softmax: log_softmax over states commutes with the column
    # gather, so do it once on the (S, O) table instead of per observation.
    log_sm = jax.nn.log_softmax(log_em.astype(jnp.float32), axis=0)

    # TPU-friendly padded sizes.
    S_pad = max(8, ((S + 7) // 8) * 8)
    O_pad = max(128, ((O + 127) // 128) * 128)
    t_tile = int(min(t_tile, max(128, ((T + 127) // 128) * 128)))
    T_pad = ((T + t_tile - 1) // t_tile) * t_tile

    # Zero padding is safe (see header comment).
    table = jnp.zeros((S_pad, O_pad), dtype=jnp.float32).at[:S, :O].set(log_sm)
    obs_p = jnp.zeros((1, T_pad), dtype=jnp.int32).at[0, :T].set(
        obs.astype(jnp.int32))

    grid = (T_pad // t_tile,)

    out = pl.pallas_call(
        _gather_kernel,
        out_shape=jax.ShapeDtypeStruct((S_pad, T_pad), jnp.float32),
        grid=grid,
        in_specs=[
            pl.BlockSpec((1, t_tile), lambda i: (0, i)),        # obs tile
            pl.BlockSpec((S_pad, O_pad), lambda i: (0, 0)),     # resident table
        ],
        out_specs=pl.BlockSpec((S_pad, t_tile), lambda i: (0, i)),
        compiler_params=pltpu.CompilerParams(
            dimension_semantics=("parallel",),          # T tiles independent
            vmem_limit_bytes=64 * 1024 * 1024,
        ),
        cost_estimate=pl.CostEstimate(
            flops=2 * S_pad * O_pad * T_pad,
            transcendentals=0,
            bytes_accessed=4 * (T_pad + S_pad * T_pad + S_pad * O_pad),
        ),
    )(obs_p, table)

    return out[:S, :T]


if __name__ == "__main__":
    # Module config (small, consistent with the PyTorch __init__):
    n_states, n_obvs = 8, 16
    S, O = 1 + n_states, 1 + n_obvs       # bookend state / bookend class
    T = 8                                  # observation sequence length

    key = jax.random.PRNGKey(0)
    k_em, k_obs = jax.random.split(key)

    # Deterministic parameter init: randn then normalize_emission (diag=False).
    log_em = jax.random.normal(k_em, (S, O), dtype=jnp.float32)
    log_em = normalize_emission(log_em)

    # Example observation indices.
    obs = jax.random.randint(k_obs, (T,), 0, O, dtype=jnp.int32)

    out = categorical_emission_forward(log_em, obs)
    out = jax.block_until_ready(out)

    # Pure-JAX reference for the forward pass (original, un-hoisted form).
    ref = jax.nn.log_softmax(log_em[:, obs], axis=0)
    assert out.shape == (S, T), out.shape
    assert out.dtype == jnp.float32
    assert jnp.allclose(out, ref, atol=1e-5), (out, ref)

    # TODO(synk): sample()/mask_grad()/finalize_training() are host-side
    # PyTorch autograd/training plumbing and are intentionally not ported.

    print("KERNEL_OK")
</pallas_src>

<mosaic_0001>
module attributes {stable_mosaic.version = 11 : i64} {
  func.func @_gather_kernel(%arg0: i32, %arg1: memref<1x128xi32, #tpu.memory_space<vmem>>, %arg2: memref<16x128xf32, #tpu.memory_space<vmem>>, %arg3: memref<16x128xf32, #tpu.memory_space<vmem>>) attributes {dimension_semantics = [#tpu.dimension_semantics<parallel>], iteration_bounds = array<i64: 1>, scalar_prefetch = 0 : i64, scratch_operands = 0 : i64, tpu.core_type = #tpu.core_type<tc>, window_params = [{transform_indices = @transform_0, window_bounds = array<i64: 1, 128>}, {pipeline_mode = #tpu.pipeline_mode<synchronous>, transform_indices = @transform_1, window_bounds = array<i64: 16, 128>}, {transform_indices = @transform_2, window_bounds = array<i64: 16, 128>}]} {
    %c0 = arith.constant 0 : index
    %c0_0 = arith.constant 0 : index
    %0 = vector.load %arg1[%c0, %c0_0] : memref<1x128xi32, #tpu.memory_space<vmem>>, vector<1x128xi32>
    %1 = tpu.iota {dimensions = array<i32: 0>} : vector<128x128xi32>
    %2 = vector.broadcast %0 : vector<1x128xi32> to vector<128x128xi32>
    %3 = arith.cmpi eq, %1, %2 : vector<128x128xi32>
    %4 = arith.extui %3 : vector<128x128xi1> to vector<128x128xi32>
    %5 = arith.sitofp %4 : vector<128x128xi32> to vector<128x128xf32>
    %c0_1 = arith.constant 0 : index
    %c0_2 = arith.constant 0 : index
    %6 = vector.load %arg2[%c0_1, %c0_2] : memref<16x128xf32, #tpu.memory_space<vmem>>, vector<16x128xf32>
    %cst = arith.constant dense<0.000000e+00> : vector<16x128xf32>
    %7 = tpu.matmul %6, %5, %cst {dimension_numbers = #tpu.dot_dimension_numbers<[1], [0], [0], [1], [0, 0, 1, 1], [], []>} : vector<16x128xf32>, vector<128x128xf32>, vector<16x128xf32> -> vector<16x128xf32>
    %c0_3 = arith.constant 0 : index
    %c0_4 = arith.constant 0 : index
    %8 = vector.load %arg3[%c0_3, %c0_4] : memref<16x128xf32, #tpu.memory_space<vmem>>, vector<16x128xf32>
    tpu.vector_store %arg3[%c0_3, %c0_4], %7 {strides = array<i32>} : memref<16x128xf32, #tpu.memory_space<vmem>>, vector<16x128xf32>,
    return
  }
  func.func @transform_0(%arg0: i32) -> (i32, i32) {
    %c0_i32 = arith.constant 0 : i32
    %c0_i32_0 = arith.constant 0 : i32
    return %c0_i32, %arg0 : i32, i32
  }
  func.func @transform_1(%arg0: i32) -> (i32, i32) {
    %c0_i32 = arith.constant 0 : i32
    %c0_i32_0 = arith.constant 0 : i32
    %c0_i32_1 = arith.constant 0 : i32
    return %c0_i32, %c0_i32_0 : i32, i32
  }
  func.func @transform_2(%arg0: i32) -> (i32, i32) {
    %c0_i32 = arith.constant 0 : i32
    %c0_i32_0 = arith.constant 0 : i32
    return %c0_i32, %arg0 : i32, i32
  }
}

</mosaic_0001>

<llo_original>
// kernel: tpu_custom_call.1
$region0: #{tpu_custom_call.1}
  #allocation0 [shape = 'u32[]', space=smem, size = 0x4, offset = 0x4, fixed_abs, tag = 'smem constant byte address 0x4 - core index']
  #allocation1 [shape = 'u32[144,128]{1,0:T(1,128)}', space=vmem, size = 0x12000, scoped, tag = 'internal scratch']
  %s0 = inlined_call_operand.hbm [shape: s32[1,128], index: 0, kind: input, shape index: {}]
  %s1 = inlined_call_operand.hbm [shape: f32[16,128], index: 1, kind: input, shape index: {}]
  %s2 = inlined_call_operand.hbm [shape: f32[16,128], index: 2, kind: output, shape index: {}]
  %s3 = sld [smem:[#allocation0]]
  $region26: #{tpu_custom_call.1} parent=0
    _
  %s5 = ssub.s32 1, %s3
  %s6 = scalar_select 0, %s5, %s3
  $region1: #{tpu_custom_call.1} parent=0
    #allocation2 [shape = 'u8[512]{0}', space=vmem, size = 0x400, scoped, tag = 'input window, operand 0, single buffered']
    #allocation3 [shape = 's32[1]{0}', space=sflag, size = 0x4, scoped, tag = 'scoped memory for tpu_custom_call.1']
    #allocation4 [shape = 's32[1]{0}', space=sflag, size = 0x4, scoped, tag = 'scoped memory for tpu_custom_call.1']
    #allocation5 [shape = 'u8[8192]{0}', space=vmem, size = 0x2000, scoped, tag = 'input window, operand 1, single buffered']
    #allocation6 [shape = 's32[1]{0}', space=sflag, size = 0x4, scoped, tag = 'scoped memory for tpu_custom_call.1']
    #allocation7 [shape = 'u8[8192]{0}', space=vmem, size = 0x2000, scoped, tag = 'output window, operand 0, single buffered']
    %7 = vsyncpa [#allocation3], 0
    %8 = vsyncpa [#allocation6], 0
    %9 = vsyncpa [#allocation4], 0
    // Predicated region
    $region2: #{tpu_custom_call.1} parent=1 // pred_check
      _
    $region3: #{tpu_custom_call.1} parent=1 // pred_check_branch
      %11 = sbr.rel (0) target = $region5
    $region4: #{tpu_custom_call.1} parent=1 // pred_region
      %s13 = ssub.s32 16, 16
      %14 = vsyncadd [#allocation3], %s13
      %s16 = sshll.u32 [#allocation2], 4
      %s17 = int_to_ptr.vmem [resolvable:$true] %s16
      %19 = dma.hbm_to_vmem [thread:$0]  %s0, 16, %s17, [#allocation3]
    $region5: #{tpu_custom_call.1} parent=1 // pred_fallthru
      _
    // Predicated region
    $region6: #{tpu_custom_call.1} parent=1 // pred_check
      _
    $region7: #{tpu_custom_call.1} parent=1 // pred_check_branch
      %21 = sbr.rel (0) target = $region9
    $region8: #{tpu_custom_call.1} parent=1 // pred_region
      %s23 = ssub.s32 256, 256
      %24 = vsyncadd [#allocation6], %s23
      %s25 = sshll.u32 [#allocation5], 4
      %s26 = int_to_ptr.vmem [resolvable:$true] %s25
      %31 = dma.hbm_to_vmem [thread:$0]  %s1, 256, %s26, [#allocation6], 128, 128, 8
    $region9: #{tpu_custom_call.1} parent=1 // pred_fallthru
      _
    // Predicated region
    $region10: #{tpu_custom_call.1} parent=1 // pred_check
      _
    $region11: #{tpu_custom_call.1} parent=1 // pred_check_branch
      %33 = sbr.rel (0) target = $region13
    $region12: #{tpu_custom_call.1} parent=1 // pred_region
      %34 = dma.done [#allocation3], 16
    $region13: #{tpu_custom_call.1} parent=1 // pred_fallthru
      _
    // Predicated region
    $region14: #{tpu_custom_call.1} parent=1 // pred_check
      _
    $region15: #{tpu_custom_call.1} parent=1 // pred_check_branch
      %36 = sbr.rel (0) target = $region17
    $region16: #{tpu_custom_call.1} parent=1 // pred_region
      %37 = dma.done [#allocation6], 256
    $region17: #{tpu_custom_call.1} parent=1 // pred_fallthru
      _
    %v38 = vld [vmem:[#allocation2] sm:$0x1]
    %v39 = vlaneseq
    %v40 = vshrl.u32 %v39, 7
    %v41 = vadd.s32 %v40, 8
    %v42 = vadd.s32 %v40, 16
    %v43 = vadd.s32 %v40, 24
    %v44 = vadd.s32 %v40, 32
    %v45 = vadd.s32 %v40, 40
    %v46 = vadd.s32 %v40, 48
    %v47 = vadd.s32 %v40, 56
    %v48 = vadd.s32 %v40, 64
    %v49 = vadd.s32 %v40, 72
    %v50 = vadd.s32 %v40, 80
    %v51 = vadd.s32 %v40, 88
    %v52 = vadd.s32 %v40, 96
    %v53 = vadd.s32 %v40, 104
    %v54 = vadd.s32 %v40, 112
    %v55 = vadd.s32 %v40, 120
    %v56 = vlaneseq
    %v57 = vshrl.u32 %v56, 7
    %v58 = vsub.s32 0, %v57
    %v59 = vrot.slane %v38, %v58
    %vm60 = vcmp.eq.s32.totalorder %v40, %v59
    %vm61 = vcmp.eq.s32.totalorder %v41, %v59
    %vm62 = vcmp.eq.s32.totalorder %v42, %v59
    %vm63 = vcmp.eq.s32.totalorder %v43, %v59
    %vm64 = vcmp.eq.s32.totalorder %v44, %v59
    %vm65 = vcmp.eq.s32.totalorder %v45, %v59
    %vm66 = vcmp.eq.s32.totalorder %v46, %v59
    %vm67 = vcmp.eq.s32.totalorder %v47, %v59
    %vm68 = vcmp.eq.s32.totalorder %v48, %v59
    %vm69 = vcmp.eq.s32.totalorder %v49, %v59
    %vm70 = vcmp.eq.s32.totalorder %v50, %v59
    %vm71 = vcmp.eq.s32.totalorder %v51, %v59
    %vm72 = vcmp.eq.s32.totalorder %v52, %v59
    %vm73 = vcmp.eq.s32.totalorder %v53, %v59
    %vm74 = vcmp.eq.s32.totalorder %v54, %v59
    %vm75 = vcmp.eq.s32.totalorder %v55, %v59
    %v76 = vsel %vm60, 1, 0
    %v77 = vsel %vm61, 1, 0
    %v78 = vsel %vm62, 1, 0
    %v79 = vsel %vm63, 1, 0
    %v80 = vsel %vm64, 1, 0
    %v81 = vsel %vm65, 1, 0
    %v82 = vsel %vm66, 1, 0
    %v83 = vsel %vm67, 1, 0
    %v84 = vsel %vm68, 1, 0
    %v85 = vsel %vm69, 1, 0
    %v86 = vsel %vm70, 1, 0
    %v87 = vsel %vm71, 1, 0
    %v88 = vsel %vm72, 1, 0
    %v89 = vsel %vm73, 1, 0
    %v90 = vsel %vm74, 1, 0
    %v91 = vsel %vm75, 1, 0
    %v92 = vcvt.s32.f32 %v76
    %v93 = vcvt.s32.f32 %v77
    %v94 = vcvt.s32.f32 %v78
    %v95 = vcvt.s32.f32 %v79
    %v96 = vcvt.s32.f32 %v80
    %v97 = vcvt.s32.f32 %v81
    %v98 = vcvt.s32.f32 %v82
    %v99 = vcvt.s32.f32 %v83
    %v100 = vcvt.s32.f32 %v84
    %v101 = vcvt.s32.f32 %v85
    %v102 = vcvt.s32.f32 %v86
    %v103 = vcvt.s32.f32 %v87
    %v104 = vcvt.s32.f32 %v88
    %v105 = vcvt.s32.f32 %v89
    %v106 = vcvt.s32.f32 %v90
    %v107 = vcvt.s32.f32 %v91
    %v108 = vld [vmem:[#allocation5] sm:$0xff]
    %v109 = vld [vmem:[#allocation5 + $0x8] sm:$0xff]
    %110 = vmatprep.subr.mxu0 0.0
    %111 = vmatpush1.msra.mxu0 %v92
    %112 = vmatprep.subr.mxu0 0.0
    %113 = vmatpush1.msra.mxu0 %v93
    %114 = vmatprep.subr.mxu0 0.0
    %115 = vmatpush1.msra.mxu0 %v94
    %116 = vmatprep.subr.mxu0 0.0
    %117 = vmatpush1.msra.mxu0 %v95
    %118 = vmatprep.subr.mxu0 0.0
    %119 = vmatpush1.msra.mxu0 %v96
    %120 = vmatprep.subr.mxu0 0.0
    %121 = vmatpush1.msra.mxu0 %v97
    %122 = vmatprep.subr.mxu0 0.0
    %123 = vmatpush1.msra.mxu0 %v98
    %124 = vmatprep.subr.mxu0 0.0
    %125 = vmatpush1.msra.mxu0 %v99
    %126 = vmatprep.subr.mxu0 0.0
    %127 = vmatpush1.msra.mxu0 %v100
    %128 = vmatprep.subr.mxu0 0.0
    %129 = vmatpush1.msra.mxu0 %v101
    %130 = vmatprep.subr.mxu0 0.0
    %131 = vmatpush1.msra.mxu0 %v102
    %132 = vmatprep.subr.mxu0 0.0
    %133 = vmatpush1.msra.mxu0 %v103
    %134 = vmatprep.subr.mxu0 0.0
    %135 = vmatpush1.msra.mxu0 %v104
    %136 = vmatprep.subr.mxu0 0.0
    %137 = vmatpush1.msra.mxu0 %v105
    %138 = vmatprep.subr.mxu0 0.0
    %139 = vmatpush1.msra.mxu0 %v106
    %140 = vmatprep.subr.mxu0 0.0
    %141 = vmatpush1.msra.mxu0 %v107
    %142 = vmatprep.subr.mxu0 0.0
    %143 = vmatpush1.msra.mxu0 0.0
    %144 = vmatprep.subr.mxu0 0.0
    %145 = vmatpush1.msra.mxu0 0.0
    %146 = vmatprep.subr.mxu0 0.0
    %147 = vmatpush1.msra.mxu0 0.0
    %148 = vmatprep.subr.mxu0 0.0
    %149 = vmatpush1.msra.mxu0 0.0
    %150 = vmatprep.subr.mxu0 0.0
    %151 = vmatpush1.msra.mxu0 0.0
    %152 = vmatprep.subr.mxu0 0.0
    %153 = vmatpush1.msra.mxu0 0.0
    %154 = vmatprep.subr.mxu0 0.0
    %155 = vmatpush1.msra.mxu0 0.0
    %156 = vmatprep.subr.mxu0 0.0
    %157 = vmatpush1.msra.mxu0 0.0
    %158 = vmatprep.subr.mxu0 0.0
    %159 = vmatpush1.msra.mxu0 0.0
    %160 = vmatprep.subr.mxu0 0.0
    %161 = vmatpush1.msra.mxu0 0.0
    %162 = vmatprep.subr.mxu0 0.0
    %163 = vmatpush1.msra.mxu0 0.0
    %164 = vmatprep.subr.mxu0 0.0
    %165 = vmatpush1.msra.mxu0 0.0
    %166 = vmatprep.subr.mxu0 0.0
    %167 = vmatpush1.msra.mxu0 0.0
    %168 = vmatprep.subr.mxu0 0.0
    %169 = vmatpush1.msra.mxu0 0.0
    %170 = vmatprep.subr.mxu0 0.0
    %171 = vmatpush1.msra.mxu0 0.0
    %172 = vmatprep.subr.mxu0 0.0
    %173 = vmatpush1.msra.mxu0 0.0
    %174 = vmatprep.mubr.f32.mxu0 0.0
    %175 = vmatmul.mubr.f32.gmra.mrb[0].mxu0 %v108
    %v176 = vpop.f32.mrb[0].mxu0
    %v177 = vadd.f32 0.0, %v176
    %v178 = vpop.f32.mrb[0].mxu0
    %179 = vmatprep.mubr.f32.mxu0 0.0
    %180 = vmatmul.mubr.f32.gmra.mrb[0].mxu0 %v109
    %v181 = vpop.f32.mrb[0].mxu0
    %v182 = vadd.f32 0.0, %v181
    %v183 = vpop.f32.mrb[0].mxu0
    %184 = vdwg.mxu0
    %185 = vst [vmem:[#allocation7] sm:$0xff] %v177
    %186 = vst [vmem:[#allocation7 + $0x8] sm:$0xff] %v182
    // Predicated region
    $region18: #{tpu_custom_call.1} parent=1 // pred_check
      _
    $region19: #{tpu_custom_call.1} parent=1 // pred_check_branch
      %188 = sbr.rel (0) target = $region21
    $region20: #{tpu_custom_call.1} parent=1 // pred_region
      %s190 = ssub.s32 256, 256
      %191 = vsyncadd [#allocation4], %s190
      %s192 = sshll.u32 [#allocation7], 4
      %s193 = int_to_ptr.vmem [resolvable:$true] %s192
      %198 = dma.vmem_to_hbm [thread:$0]  %s193, 256, %s2, [#allocation4], 128, 128, 8
    $region21: #{tpu_custom_call.1} parent=1 // pred_fallthru
      _
    // Predicated region
    $region22: #{tpu_custom_call.1} parent=1 // pred_check
      _
    $region23: #{tpu_custom_call.1} parent=1 // pred_check_branch
      %200 = sbr.rel (0) target = $region25
    $region24: #{tpu_custom_call.1} parent=1 // pred_region
      %201 = dma.done [#allocation4], 256
    $region25: #{tpu_custom_call.1} parent=1 // pred_fallthru
      _
    %202 = vsyncpa [#allocation3], 1
    %203 = vsyncpa [#allocation6], 1
    %204 = vsyncpa [#allocation4], 1

</llo_original>
